<compile_context>
chip_gen: v7x
topology: tpu7x:2x2x1
jax: 0.10.0
libtpu: 0.0.40
codegen_flags: <defaults>
</compile_context>

<pallas_src>
import functools

import jax
import jax.numpy as jnp
from jax.experimental import pallas as pl
from jax.experimental.pallas import tpu as pltpu

EPS = 1e-5
LANE = 128
SUBLANE = 8
NUM_PARTIALS = 2          # v7x has 2 TensorCores; extra partial is harmless elsewhere


def _round_up(x, m):
    return (x + m - 1) // m * m


def _vmem_limit_bytes():
    """Generation-aware VMEM limit (~70% of physical, capped at 96 MiB)."""
    cap = 64 << 20                                   # conservative (v7x physical)
    try:
        info = pltpu.get_tpu_info()
        cap = int(getattr(info, "vmem_capacity_bytes", cap)) or cap
    except Exception:
        pass
    return min(int(cap * 0.7), 96 << 20)


# ---------------------------------------------------------------------------
# Kernels
# ---------------------------------------------------------------------------
def _bn_fused_kernel(x_ref, gamma_ref, beta_ref, o_ref, *, inv_n):
    """Whole-array-resident fast path: stats + normalize in one pass."""
    x = x_ref[...].astype(jnp.float32)                       # (n, c)
    mean = jnp.sum(x, axis=0, keepdims=True) * inv_n
    var = jnp.maximum(jnp.sum(x * x, axis=0, keepdims=True) * inv_n
                      - mean * mean, 0.0)
    scale = gamma_ref[...] * jax.lax.rsqrt(var + EPS)
    shift = beta_ref[...] - mean * scale
    o_ref[...] = (x * scale + shift).astype(o_ref.dtype)


def _bn_stats_kernel(x_ref, sum_ref, sq_ref, *, tile, rows, tiles_per_partial):
    """Per-lane sum / sum-of-squares, accumulated per TensorCore partial."""
    p = pl.program_id(0)          # partial index ("parallel" -> per-core on v7x)
    i = pl.program_id(1)          # tile index within this partial ("arbitrary")

    @pl.when(i == 0)
    def _():
        sum_ref[...] = jnp.zeros_like(sum_ref)
        sq_ref[...] = jnp.zeros_like(sq_ref)

    x = x_ref[...].astype(jnp.float32)                       # (tile, w)
    # Mask rows beyond the real row count (boundary blocks / duplicated
    # clamped tiles) so they do not bias the statistics.
    row = (p * tiles_per_partial + i) * tile + jax.lax.broadcasted_iota(
        jnp.int32, x.shape, 0)
    x = jnp.where(row < rows, x, 0.0)

    sum_ref[0, :, :] += jnp.sum(x, axis=0, keepdims=True)
    sq_ref[0, :, :] += jnp.sum(x * x, axis=0, keepdims=True)


def _bn_norm_kernel(scale_ref, shift_ref, x_ref, o_ref):
    """y = x * scale + shift (1 mul + 1 add per element)."""
    o_ref[...] = (x_ref[...].astype(jnp.float32) * scale_ref[...]
                  + shift_ref[...]).astype(o_ref.dtype)


# ---------------------------------------------------------------------------
# Wrapper
# ---------------------------------------------------------------------------
def batchnorm1d(x, gamma, beta, *, block_bytes=2 << 20, allow_fast_path=True):
    """Training-mode BatchNorm over (N, C); gamma/beta are (C,) affine params."""
    n, c = x.shape
    out_dtype = x.dtype
    itemsize = jnp.dtype(x.dtype).itemsize
    vmem_limit = _vmem_limit_bytes()
    budget = vmem_limit - (2 << 20)                  # headroom

    gamma2 = gamma.astype(jnp.float32).reshape(1, c)
    beta2 = beta.astype(jnp.float32).reshape(1, c)

    # ---------------- fast path: whole problem resident in VMEM -------------
    c_vmem = _round_up(c, LANE)
    n_vmem = _round_up(n, SUBLANE)
    fast_bytes = n_vmem * c_vmem * (2 * itemsize + 2 * 4) + 8 * c_vmem * 4
    if allow_fast_path and fast_bytes <= budget // 2:
        return pl.pallas_call(
            functools.partial(_bn_fused_kernel, inv_n=1.0 / n),
            out_shape=jax.ShapeDtypeStruct((n, c), out_dtype),
            grid=(1,),
            in_specs=[pl.BlockSpec((n, c), lambda i: (0, 0)),
                      pl.BlockSpec((1, c), lambda i: (0, 0)),
                      pl.BlockSpec((1, c), lambda i: (0, 0))],
            out_specs=pl.BlockSpec((n, c), lambda i: (0, 0)),
            compiler_params=pltpu.CompilerParams(
                dimension_semantics=("arbitrary",),
                vmem_limit_bytes=vmem_limit),
        )(x, gamma2, beta2)

    # ---------------- two-phase streaming path ------------------------------
    # Fold small channel counts into lanes: (n, c) -> (n // f, f * c) (free
    # contiguous reshape), so we never pad the channel axis.
    f = 1
    if c < LANE and LANE % c == 0:
        f = LANE // c
        while n % f:
            f //= 2
    rows, w = n // f, f * c
    x2 = x.reshape(rows, w) if f > 1 else x
    w_vmem = _round_up(w, LANE)                      # VMEM lane padding only

    def fit_tile(per_row_vmem):
        """Rows per block: ~block_bytes of real data, clamped to VMEM budget."""
        if rows <= SUBLANE:
            return rows
        t = block_bytes // max(1, w * itemsize)
        t = max(SUBLANE, min(t, rows) // SUBLANE * SUBLANE)
        while t > SUBLANE and t * per_row_vmem > budget:
            t = max(SUBLANE, (t // 2) // SUBLANE * SUBLANE)
        return t

    # Phase 1: per-channel statistics. x double-buffered in + ~2 f32 temps.
    t1 = fit_tile(2 * w_vmem * itemsize + 2 * w_vmem * 4)
    num_tiles = pl.cdiv(rows, t1)
    tpp = pl.cdiv(num_tiles, NUM_PARTIALS)           # tiles per partial

    stats_kernel = functools.partial(
        _bn_stats_kernel, tile=t1, rows=rows, tiles_per_partial=tpp)
    x_index = lambda p, i: (jnp.minimum(p * tpp + i, num_tiles - 1), 0)
    part_index = lambda p, i: (p, 0, 0)

    sums, sqs = pl.pallas_call(
        stats_kernel,
        out_shape=(jax.ShapeDtypeStruct((NUM_PARTIALS, 1, w), jnp.float32),
                   jax.ShapeDtypeStruct((NUM_PARTIALS, 1, w), jnp.float32)),
        grid=(NUM_PARTIALS, tpp),
        in_specs=[pl.BlockSpec((t1, w), x_index)],
        out_specs=(pl.BlockSpec((1, 1, w), part_index),
                   pl.BlockSpec((1, 1, w), part_index)),
        compiler_params=pltpu.CompilerParams(
            dimension_semantics=("parallel", "arbitrary"),
            vmem_limit_bytes=vmem_limit),
    )(x2)

    # Tiny f32 epilogue: combine core partials + fold groups, fuse affine.
    s = jnp.sum(sums.reshape(NUM_PARTIALS * f, c), axis=0)
    sq = jnp.sum(sqs.reshape(NUM_PARTIALS * f, c), axis=0)
    mean = s / n
    var = jnp.maximum(sq / n - mean * mean, 0.0)
    scale_c = gamma2.reshape(c) * jax.lax.rsqrt(var + EPS)
    shift_c = beta2.reshape(c) - mean * scale_c
    scale = jnp.tile(scale_c, f).reshape(1, w)
    shift = jnp.tile(shift_c, f).reshape(1, w)

    # Phase 2: normalize. x in + y out double-buffered + 1 f32 temp.
    t2 = fit_tile(4 * w_vmem * itemsize + w_vmem * 4)
    num_tiles2 = pl.cdiv(rows, t2)

    y2 = pl.pallas_call(
        _bn_norm_kernel,
        out_shape=jax.ShapeDtypeStruct((rows, w), out_dtype),
        grid=(num_tiles2,),
        in_specs=[pl.BlockSpec((1, w), lambda i: (0, 0)),
                  pl.BlockSpec((1, w), lambda i: (0, 0)),
                  pl.BlockSpec((t2, w), lambda i: (i, 0))],
        out_specs=pl.BlockSpec((t2, w), lambda i: (i, 0)),
        compiler_params=pltpu.CompilerParams(
            dimension_semantics=("parallel",),
            vmem_limit_bytes=vmem_limit),
    )(scale, shift, x2)

    return y2.reshape(n, c) if f > 1 else y2


# ---------------------------------------------------------------------------
# Reference & tests
# ---------------------------------------------------------------------------
def _reference(x, gamma, beta):
    mean = jnp.mean(x, axis=0, keepdims=True)
    var = jnp.mean((x - mean) ** 2, axis=0, keepdims=True)
    return (x - mean) / jnp.sqrt(var + EPS) * gamma + beta


def _check(y, x, gamma, beta, atol=1e-4, rtol=1e-4, msg=""):
    ref = _reference(x.astype(jnp.float32), gamma.astype(jnp.float32),
                     beta.astype(jnp.float32))
    assert jnp.allclose(y.astype(jnp.float32), ref, atol=atol, rtol=rtol), (
        "mismatch vs reference: " + msg)


if __name__ == "__main__":
    key = jax.random.PRNGKey(0)
    k1, k2, k3, k4, k5, k6 = jax.random.split(key, 6)

    # 1) Module-like usage (BatchNorm2d defaults: weight=1, bias=0).
    #    Small input -> fused single-pass fast path.
    N, DIM = 8, 32
    x = jax.random.normal(k1, (N, DIM), jnp.float32) * 2.0 + 0.5
    gamma = jnp.ones((DIM,), jnp.float32)
    beta = jnp.zeros((DIM,), jnp.float32)
    y = jax.block_until_ready(batchnorm1d(x, gamma, beta))
    _check(y, x, gamma, beta, msg="fast path")

    # 2) Forced two-phase path: channel fold (C=32 -> 64 lanes), multi-tile
    #    accumulation, boundary-row masking, two stats partials.
    x2 = jax.random.normal(k2, (50, 32), jnp.float32) * 3.0 - 1.0
    g2 = jax.random.normal(k3, (32,), jnp.float32) * 0.2 + 1.0
    b2 = jax.random.normal(k4, (32,), jnp.float32) * 0.1
    y2 = jax.block_until_ready(
        batchnorm1d(x2, g2, b2, allow_fast_path=False, block_bytes=4096))
    _check(y2, x2, g2, b2, msg="two-phase folded")

    # 3) Non-128-dividing channel count (no fold, masked lanes), odd batch,
    #    clamped duplicate tile on the second partial.
    x3 = jax.random.normal(k5, (37, 48), jnp.float32) * 1.5 + 2.0
    g3 = jnp.ones((48,), jnp.float32)
    b3 = jnp.zeros((48,), jnp.float32)
    y3 = jax.block_until_ready(
        batchnorm1d(x3, g3, b3, allow_fast_path=False, block_bytes=4096))
    _check(y3, x3, g3, b3, msg="two-phase unfolded")

    # 4) bf16 input/output through the streaming path.
    x4 = (jax.random.normal(k6, (64, 128), jnp.float32) * 2.0
          + 0.25).astype(jnp.bfloat16)
    g4 = jnp.ones((128,), jnp.float32)
    b4 = jnp.zeros((128,), jnp.float32)
    y4 = jax.block_until_ready(
        batchnorm1d(x4, g4, b4, allow_fast_path=False, block_bytes=8192))
    _check(y4, x4, g4, b4, atol=5e-2, rtol=5e-2, msg="bf16")

    print("KERNEL_OK")
</pallas_src>

<mosaic_0001>
module attributes {stable_mosaic.version = 11 : i64} {
  func.func @_bn_fused_kernel(%arg0: i32, %arg1: memref<8x32xf32, #tpu.memory_space<vmem>>, %arg2: memref<1x32xf32, #tpu.memory_space<vmem>>, %arg3: memref<1x32xf32, #tpu.memory_space<vmem>>, %arg4: memref<8x32xf32, #tpu.memory_space<vmem>>) attributes {dimension_semantics = [#tpu.dimension_semantics<arbitrary>], iteration_bounds = array<i64: 1>, scalar_prefetch = 0 : i64, scratch_operands = 0 : i64, tpu.core_type = #tpu.core_type<tc>, window_params = [{pipeline_mode = #tpu.pipeline_mode<synchronous>, transform_indices = @transform_0, window_bounds = array<i64: 8, 32>}, {pipeline_mode = #tpu.pipeline_mode<synchronous>, transform_indices = @transform_1, window_bounds = array<i64: 1, 32>}, {pipeline_mode = #tpu.pipeline_mode<synchronous>, transform_indices = @transform_2, window_bounds = array<i64: 1, 32>}, {pipeline_mode = #tpu.pipeline_mode<synchronous>, transform_indices = @transform_3, window_bounds = array<i64: 8, 32>}]} {
    %c0 = arith.constant 0 : index
    %c0_0 = arith.constant 0 : index
    %0 = vector.load %arg1[%c0, %c0_0] : memref<8x32xf32, #tpu.memory_space<vmem>>, vector<8x32xf32>
    %cst = arith.constant dense<0.000000e+00> : vector<32xf32>
    %1 = vector.multi_reduction <add>, %0, %cst [0] : vector<8x32xf32> to vector<32xf32>
    %2 = vector.shape_cast %1 : vector<32xf32> to vector<1x32xf32>
    %cst_1 = arith.constant 1.250000e-01 : f32
    %3 = vector.broadcast %cst_1 : f32 to vector<1x32xf32>
    %4 = arith.mulf %2, %3 : vector<1x32xf32>
    %5 = arith.mulf %0, %0 : vector<8x32xf32>
    %cst_2 = arith.constant dense<0.000000e+00> : vector<32xf32>
    %6 = vector.multi_reduction <add>, %5, %cst_2 [0] : vector<8x32xf32> to vector<32xf32>
    %7 = vector.shape_cast %6 : vector<32xf32> to vector<1x32xf32>
    %cst_3 = arith.constant 1.250000e-01 : f32
    %8 = vector.broadcast %cst_3 : f32 to vector<1x32xf32>
    %9 = arith.mulf %7, %8 : vector<1x32xf32>
    %10 = arith.mulf %4, %4 : vector<1x32xf32>
    %11 = arith.subf %9, %10 : vector<1x32xf32>
    %cst_4 = arith.constant 0.000000e+00 : f32
    %12 = vector.broadcast %cst_4 : f32 to vector<1x32xf32>
    %13 = arith.maximumf %11, %12 : vector<1x32xf32>
    %c0_5 = arith.constant 0 : index
    %c0_6 = arith.constant 0 : index
    %14 = vector.load %arg2[%c0_5, %c0_6] : memref<1x32xf32, #tpu.memory_space<vmem>>, vector<1x32xf32>
    %cst_7 = arith.constant 9.99999974E-6 : f32
    %15 = vector.broadcast %cst_7 : f32 to vector<1x32xf32>
    %16 = arith.addf %13, %15 : vector<1x32xf32>
    %17 = math.rsqrt %16 : vector<1x32xf32>
    %18 = arith.mulf %14, %17 : vector<1x32xf32>
    %c0_8 = arith.constant 0 : index
    %c0_9 = arith.constant 0 : index
    %19 = vector.load %arg3[%c0_8, %c0_9] : memref<1x32xf32, #tpu.memory_space<vmem>>, vector<1x32xf32>
    %20 = arith.mulf %4, %18 : vector<1x32xf32>
    %21 = arith.subf %19, %20 : vector<1x32xf32>
    %22 = vector.broadcast %18 : vector<1x32xf32> to vector<8x32xf32>
    %23 = arith.mulf %0, %22 : vector<8x32xf32>
    %24 = vector.broadcast %21 : vector<1x32xf32> to vector<8x32xf32>
    %25 = arith.addf %23, %24 : vector<8x32xf32>
    %c0_10 = arith.constant 0 : index
    %c0_11 = arith.constant 0 : index
    %26 = vector.load %arg4[%c0_10, %c0_11] : memref<8x32xf32, #tpu.memory_space<vmem>>, vector<8x32xf32>
    tpu.vector_store %arg4[%c0_10, %c0_11], %25 {strides = array<i32>} : memref<8x32xf32, #tpu.memory_space<vmem>>, vector<8x32xf32>,
    return
  }
  func.func @transform_0(%arg0: i32) -> (i32, i32) {
    %c0_i32 = arith.constant 0 : i32
    %c0_i32_0 = arith.constant 0 : i32
    %c0_i32_1 = arith.constant 0 : i32
    return %c0_i32, %c0_i32_0 : i32, i32
  }
  func.func @transform_1(%arg0: i32) -> (i32, i32) {
    %c0_i32 = arith.constant 0 : i32
    %c0_i32_0 = arith.constant 0 : i32
    %c0_i32_1 = arith.constant 0 : i32
    return %c0_i32, %c0_i32_0 : i32, i32
  }
  func.func @transform_2(%arg0: i32) -> (i32, i32) {
    %c0_i32 = arith.constant 0 : i32
    %c0_i32_0 = arith.constant 0 : i32
    %c0_i32_1 = arith.constant 0 : i32
    return %c0_i32, %c0_i32_0 : i32, i32
  }
  func.func @transform_3(%arg0: i32) -> (i32, i32) {
    %c0_i32 = arith.constant 0 : i32
    %c0_i32_0 = arith.constant 0 : i32
    %c0_i32_1 = arith.constant 0 : i32
    return %c0_i32, %c0_i32_0 : i32, i32
  }
}

</mosaic_0001>

<llo_original>
// kernel: tpu_custom_call.1
$region0: #{tpu_custom_call.1}
  #allocation0 [shape = 'u32[]', space=smem, size = 0x4, offset = 0x4, fixed_abs, tag = 'smem constant byte address 0x4 - core index']
  #allocation1 [shape = 'u32[144,128]{1,0:T(1,128)}', space=vmem, size = 0x12000, scoped, tag = 'internal scratch']
  %s0 = inlined_call_operand.hbm [shape: f32[8,32], index: 0, kind: input, shape index: {}]
  %s1 = inlined_call_operand.vmem [shape: f32[1,32], index: 1, kind: input, shape index: {}]
  %s2 = inlined_call_operand.vmem [shape: f32[1,32], index: 2, kind: input, shape index: {}]
  %s3 = inlined_call_operand.hbm [shape: f32[8,32], index: 3, kind: output, shape index: {}]
  %s4 = sld [smem:[#allocation0]]
  $region26: #{tpu_custom_call.1} parent=0
    _
  %s6 = ssub.s32 1, %s4
  %s7 = scalar_select 0, %s6, %s4
  $region1: #{tpu_custom_call.1} parent=0
    #allocation2 [shape = 'u8[4096]{0}', space=vmem, size = 0x1000, scoped, tag = 'input window, operand 0, single buffered']
    #allocation3 [shape = 's32[1]{0}', space=sflag, size = 0x4, scoped, tag = 'scoped memory for tpu_custom_call.1']
    #allocation4 [shape = 's32[1]{0}', space=sflag, size = 0x4, scoped, tag = 'scoped memory for tpu_custom_call.1']
    #allocation5 [shape = 'u8[4096]{0}', space=vmem, size = 0x1000, scoped, tag = 'output window, operand 0, single buffered']
    %8 = vsyncpa [#allocation3], 0
    %9 = vsyncpa [#allocation4], 0
    // Predicated region
    $region2: #{tpu_custom_call.1} parent=1 // pred_check
      _
    $region3: #{tpu_custom_call.1} parent=1 // pred_check_branch
      %11 = sbr.rel (0) target = $region5
    $region4: #{tpu_custom_call.1} parent=1 // pred_region
      %s13 = ssub.s32 128, 128
      %14 = vsyncadd [#allocation3], %s13
      %s16 = sshll.u32 [#allocation2], 4
      %s17 = int_to_ptr.vmem [resolvable:$true] %s16
      %19 = dma.hbm_to_vmem [thread:$0]  %s0, 128, %s17, [#allocation3]
    $region5: #{tpu_custom_call.1} parent=1 // pred_fallthru
      _
    // Predicated region
    $region6: #{tpu_custom_call.1} parent=1 // pred_check
      _
    $region7: #{tpu_custom_call.1} parent=1 // pred_check_branch
      %21 = sbr.rel (0) target = $region9
    $region8: #{tpu_custom_call.1} parent=1 // pred_region
      _
    $region9: #{tpu_custom_call.1} parent=1 // pred_fallthru
      _
    // Predicated region
    $region10: #{tpu_custom_call.1} parent=1 // pred_check
      _
    $region11: #{tpu_custom_call.1} parent=1 // pred_check_branch
      %23 = sbr.rel (0) target = $region13
    $region12: #{tpu_custom_call.1} parent=1 // pred_region
      _
    $region13: #{tpu_custom_call.1} parent=1 // pred_fallthru
      _
    // Predicated region
    $region14: #{tpu_custom_call.1} parent=1 // pred_check
      _
    $region15: #{tpu_custom_call.1} parent=1 // pred_check_branch
      %25 = sbr.rel (0) target = $region17
    $region16: #{tpu_custom_call.1} parent=1 // pred_region
      %26 = dma.done [#allocation3], 128
    $region17: #{tpu_custom_call.1} parent=1 // pred_fallthru
      _
    %v27 = vld [vmem:[#allocation2] sm:$0xff]
    %vm28 = vcmask 261120
    %v29 = vsel %vm28, %v27, 0.0
    %v30 = vrot.slane %v29, 4
    %v31 = vadd.f32 %v29, %v30
    %v32 = vrot.slane %v31, 2
    %v33 = vadd.f32 %v31, %v32
    %v34 = vrot.slane %v33, 1
    %v35 = vadd.f32 %v33, %v34
    %v36 = vmul.f32 %v35, 0.125
    %v37 = vmul.f32 %v27, %v27
    %v38 = vsel %vm28, %v37, 0.0
    %v39 = vrot.slane %v38, 4
    %v40 = vadd.f32 %v38, %v39
    %v41 = vrot.slane %v40, 2
    %v42 = vadd.f32 %v40, %v41
    %v43 = vrot.slane %v42, 1
    %v44 = vadd.f32 %v42, %v43
    %v45 = vmul.f32 %v44, 0.125
    %v46 = vmul.f32 %v36, %v36
    %v47 = vsub.f32 %v45, %v46
    %v48 = vmax.f32 %v47, 0.0
    %v49 = vld [vmem:[%s1] sm:$0x1]
    %v50 = vadd.f32 %v48, 1e-05
    %v51 = vrsqrt.pop %v50
    %v52 = vmul.f32 %v49, %v51
    %v53 = vld [vmem:[%s2] sm:$0x1]
    %v54 = vmul.f32 %v36, %v52
    %v55 = vsub.f32 %v53, %v54
    %v57 = vlaneseq
    %v58 = vshrl.u32 %v57, 7
    %v59 = vsub.s32 0, %v58
    %v60 = vrot.slane %v52, %v59
    %v62 = vmul.f32 %v27, %v60
    %v64 = vlaneseq
    %v65 = vshrl.u32 %v64, 7
    %v66 = vsub.s32 0, %v65
    %v67 = vrot.slane %v55, %v66
    %v69 = vadd.f32 %v62, %v67
    %70 = vst.msk [vmem:[#allocation5] sm:$0xff] %vm28, %v69
    // Predicated region
    $region18: #{tpu_custom_call.1} parent=1 // pred_check
      _
    $region19: #{tpu_custom_call.1} parent=1 // pred_check_branch
      %72 = sbr.rel (0) target = $region21
    $region20: #{tpu_custom_call.1} parent=1 // pred_region
      %s74 = ssub.s32 128, 128
      %75 = vsyncadd [#allocation4], %s74
      %s77 = sshll.u32 [#allocation5], 4
      %s78 = int_to_ptr.vmem [resolvable:$true] %s77
      %80 = dma.vmem_to_hbm [thread:$0]  %s78, 128, %s3, [#allocation4]
    $region21: #{tpu_custom_call.1} parent=1 // pred_fallthru
      _
    // Predicated region
    $region22: #{tpu_custom_call.1} parent=1 // pred_check
      _
    $region23: #{tpu_custom_call.1} parent=1 // pred_check_branch
      %82 = sbr.rel (0) target = $region25
    $region24: #{tpu_custom_call.1} parent=1 // pred_region
      %83 = dma.done [#allocation4], 128
    $region25: #{tpu_custom_call.1} parent=1 // pred_fallthru
      _
    %84 = vsyncpa [#allocation3], 1
    %85 = vsyncpa [#allocation4], 1

</llo_original>
